<compile_context>
chip_gen: v6e
topology: v6e:2x2x1
jax: 0.10.0
libtpu: 0.0.40
codegen_flags: <defaults>
</compile_context>

<pallas_src>
import functools

import jax
import jax.numpy as jnp
from jax.experimental import pallas as pl
from jax.experimental.pallas import tpu as pltpu

EPS = 1e-06


def _proposal_kernel(mask_ref, u_ref, x_ref, w_ref, b_ref, iout_ref, fout_ref,
                     *, testing, num_items, num_counts, c_pad):
    maskf = mask_ref[...]                                   # (1, BT) f32, 1.0 for real rows
    x = x_ref[...]                                          # (E, BT) f32
    bt = x.shape[1]

    # One fused MXU matmul for all items: (NI*C_pad, E) @ (E, BT).
    logits = jnp.dot(w_ref[...], x, preferred_element_type=jnp.float32) + b_ref[...]

    # Count-index iota along sublanes (counts axis) + validity of padded count rows.
    cnt = jax.lax.broadcasted_iota(jnp.int32, (c_pad, bt), 0)       # (C_pad, BT)
    valid_cnt = cnt < num_counts
    # Lower-triangular-ish matrix so  tri @ probs == cumsum(probs, axis=0).
    rk = jax.lax.broadcasted_iota(jnp.int32, (c_pad, c_pad), 0)
    ck = jax.lax.broadcasted_iota(jnp.int32, (c_pad, c_pad), 1)
    tri = (ck <= rk).astype(jnp.float32)

    ent = jnp.zeros((1, bt), jnp.float32)                   # per-batch-column entropy
    match = jnp.zeros((1, bt), jnp.int32)                   # per-batch-column match count
    a_rows = []
    lg_rows = []

    for i in range(num_items):                              # static unroll (num_items == 3)
        lg = logits[i * c_pad:(i + 1) * c_pad, :]           # (C_pad, BT), sublane-aligned slice
        m = jnp.max(lg, axis=0, keepdims=True)              # padded rows have logits -1e30
        e = jnp.exp(lg - m)
        s = jnp.sum(e, axis=0, keepdims=True)
        probs = jnp.clip(e / s, EPS, 1.0 - EPS)
        logp = jnp.log(probs)

        # greedy argmax over counts (first index attaining the max).
        maxp = jnp.max(probs, axis=0, keepdims=True)
        greedy = jnp.min(jnp.where(probs >= maxp, cnt, c_pad), axis=0, keepdims=True)

        if testing:
            a = greedy
            lg_rows.append(jnp.zeros((1, bt), jnp.float32))
        else:
            # multinomial sample via inverse CDF on the clamped (unnormalized) probs.
            pv = jnp.where(valid_cnt, probs, 0.0)
            cdf = jnp.dot(tri, pv, preferred_element_type=jnp.float32)   # (C_pad, BT)
            total = cdf[num_counts - 1:num_counts, :]                    # (1, BT)
            thr = u_ref[i:i + 1, :] * total
            a = jnp.sum((cdf < thr).astype(jnp.int32), axis=0, keepdims=True)
            a = jnp.minimum(a, num_counts - 1)
            # gather log prob at sampled index via one-hot reduce.
            lg_rows.append(jnp.sum(jnp.where(cnt == a, logp, 0.0),
                                   axis=0, keepdims=True))

        ent = ent + jnp.sum(jnp.where(valid_cnt, -probs * logp, 0.0),
                            axis=0, keepdims=True)
        match = match + (greedy == a).astype(jnp.int32)
        a_rows.append(a)

    # Single lane-dense store per output slab.
    iout_ref[...] = jnp.concatenate(a_rows + [jnp.where(maskf > 0.0, match, 0)], axis=0)
    fout_ref[...] = jnp.concatenate(lg_rows + [ent * maskf], axis=0)


def proposal_policy_forward(x, w_stacked, b_stacked, key, *, testing, block_batch=1024):
    """Pallas-backed forward of ProposalPolicy.

    Args:
      x:          (B, E) float32
      w_stacked:  (num_items, num_counts, E) float32  (PyTorch Linear weight layout)
      b_stacked:  (num_items, num_counts)    float32
      key:        jax PRNG key for multinomial sampling (used iff not testing)
      testing:    Python bool — greedy vs. stochastic path (compile-time).

    Returns: (nodes, proposal, entropy, matches_argmax_count, stochastic_draws)
    """
    B, E = x.shape
    NI, C, _ = w_stacked.shape
    C_pad = ((C + 7) // 8) * 8
    NIC = NI * C_pad

    LANE = 128
    B_min = max(LANE, ((B + LANE - 1) // LANE) * LANE)      # lane-align the batch
    BT = min(int(block_batch), B_min)                       # batch tile (multiple of 128)
    B_pad = ((B_min + BT - 1) // BT) * BT
    G = B_pad // BT

    # --- glue: fuse + pad parameters, transpose x so batch is lane-dense -----
    w = jnp.zeros((NI, C_pad, E), jnp.float32).at[:, :C, :].set(
        w_stacked.astype(jnp.float32)).reshape(NIC, E)
    b = jnp.full((NI, C_pad), -1e30, jnp.float32).at[:, :C].set(
        b_stacked.astype(jnp.float32)).reshape(NIC, 1)
    xT = jnp.zeros((E, B_pad), jnp.float32).at[:, :B].set(x.astype(jnp.float32).T)
    mask = (jnp.arange(B_pad) < B).astype(jnp.float32).reshape(1, B_pad)
    # Host-side uniforms (distribution-equivalent to torch.multinomial's RNG).
    u = jax.random.uniform(key, (NI, B_pad), jnp.float32)

    kernel = functools.partial(
        _proposal_kernel, testing=bool(testing),
        num_items=NI, num_counts=C, c_pad=C_pad)

    iout, fout = pl.pallas_call(
        kernel,
        grid=(G,),
        out_shape=(
            jax.ShapeDtypeStruct((NI + 1, B_pad), jnp.int32),    # proposal rows + match row
            jax.ShapeDtypeStruct((NI + 1, B_pad), jnp.float32),  # log_g rows + entropy row
        ),
        in_specs=[
            pl.BlockSpec((1, BT), lambda g: (0, g)),             # mask
            pl.BlockSpec((NI, BT), lambda g: (0, g)),            # uniforms
            pl.BlockSpec((E, BT), lambda g: (0, g)),             # x^T
            pl.BlockSpec((NIC, E), lambda g: (0, 0)),            # fused weights (resident)
            pl.BlockSpec((NIC, 1), lambda g: (0, 0)),            # fused biases  (resident)
        ],
        out_specs=(
            pl.BlockSpec((NI + 1, BT), lambda g: (0, g)),
            pl.BlockSpec((NI + 1, BT), lambda g: (0, g)),
        ),
        compiler_params=pltpu.CompilerParams(
            dimension_semantics=("parallel",),
            vmem_limit_bytes=32 * 1024 * 1024,
        ),
    )(mask, u, xT, w, b)

    proposal = iout[:NI, :B].T                               # (B, NI) int32 (torch uses int64)
    matches_argmax_count = jnp.sum(iout[NI, :B]).astype(jnp.int32)
    entropy = jnp.sum(fout[NI, :B])
    if testing:
        nodes = []
    else:
        nodes = [fout[i, :B].reshape(B, 1) for i in range(NI)]
    stochastic_draws = B * NI
    return nodes, proposal, entropy, matches_argmax_count, stochastic_draws


if __name__ == "__main__":
    # Small, module-consistent shapes: batch=8, embedding=32, 6 counts, 3 items.
    B, E, C, NI = 8, 32, 6, 3

    key = jax.random.PRNGKey(0)
    kx, kw, kb, ku = jax.random.split(key, 4)

    x = jax.random.normal(kx, (B, E), jnp.float32)
    bound = 1.0 / (E ** 0.5)                                 # nn.Linear-style init
    W = jax.random.uniform(kw, (NI, C, E), jnp.float32, -bound, bound)
    bias = jax.random.uniform(kb, (NI, C), jnp.float32, -bound, bound)

    # Stochastic (training) path.
    nodes, proposal, entropy, matches, draws = proposal_policy_forward(
        x, W, bias, ku, testing=False)
    jax.block_until_ready((proposal, entropy, matches))
    jax.block_until_ready(nodes)

    # Greedy (testing) path.
    nodes_t, proposal_t, entropy_t, matches_t, draws_t = proposal_policy_forward(
        x, W, bias, ku, testing=True)
    jax.block_until_ready((proposal_t, entropy_t, matches_t))

    # Pure-JAX reference for validation.
    def ref_probs(i):
        logits = x @ W[i].T + bias[i]
        return jnp.clip(jax.nn.softmax(logits, axis=1), EPS, 1.0 - EPS)

    ref_greedy = jnp.stack(
        [jnp.argmax(ref_probs(i), axis=1) for i in range(NI)], axis=1).astype(jnp.int32)
    ref_entropy = sum(float(jnp.sum(-ref_probs(i) * jnp.log(ref_probs(i))))
                      for i in range(NI))

    # Greedy-path checks.
    assert proposal_t.shape == (B, NI) and proposal_t.dtype == jnp.int32
    assert bool(jnp.all(proposal_t == ref_greedy))
    assert abs(float(entropy_t) - ref_entropy) <= 1e-3 + 1e-4 * abs(ref_entropy)
    assert int(matches_t) == B * NI and len(nodes_t) == 0 and draws_t == B * NI

    # Stochastic-path checks.
    assert proposal.shape == (B, NI) and len(nodes) == NI and nodes[0].shape == (B, 1)
    assert bool(jnp.all((proposal >= 0) & (proposal < C)))
    for i in range(NI):
        g_ref = jnp.log(ref_probs(i)[jnp.arange(B), proposal[:, i]]).reshape(B, 1)
        assert bool(jnp.allclose(nodes[i], g_ref, atol=1e-4, rtol=1e-4))
    assert int(matches) == int(jnp.sum((proposal == ref_greedy).astype(jnp.int32)))
    assert abs(float(entropy) - ref_entropy) <= 1e-3 + 1e-4 * abs(ref_entropy)
    assert draws == B * NI

    print("KERNEL_OK")
</pallas_src>

<mosaic_0001>
module attributes {stable_mosaic.version = 11 : i64} {
  func.func @_proposal_kernel(%arg0: i32, %arg1: memref<1x128xf32, #tpu.memory_space<vmem>>, %arg2: memref<3x128xf32, #tpu.memory_space<vmem>>, %arg3: memref<32x128xf32, #tpu.memory_space<vmem>>, %arg4: memref<24x32xf32, #tpu.memory_space<vmem>>, %arg5: memref<24x1xf32, #tpu.memory_space<vmem>>, %arg6: memref<4x128xi32, #tpu.memory_space<vmem>>, %arg7: memref<4x128xf32, #tpu.memory_space<vmem>>) attributes {dimension_semantics = [#tpu.dimension_semantics<parallel>], iteration_bounds = array<i64: 1>, scalar_prefetch = 0 : i64, scratch_operands = 0 : i64, tpu.core_type = #tpu.core_type<tc>, window_params = [{transform_indices = @transform_0, window_bounds = array<i64: 1, 128>}, {transform_indices = @transform_1, window_bounds = array<i64: 3, 128>}, {transform_indices = @transform_2, window_bounds = array<i64: 32, 128>}, {pipeline_mode = #tpu.pipeline_mode<synchronous>, transform_indices = @transform_3, window_bounds = array<i64: 24, 32>}, {pipeline_mode = #tpu.pipeline_mode<synchronous>, transform_indices = @transform_4, window_bounds = array<i64: 24, 1>}, {transform_indices = @transform_5, window_bounds = array<i64: 4, 128>}, {transform_indices = @transform_6, window_bounds = array<i64: 4, 128>}]} {
    %c0 = arith.constant 0 : index
    %c0_0 = arith.constant 0 : index
    %0 = vector.load %arg1[%c0, %c0_0] : memref<1x128xf32, #tpu.memory_space<vmem>>, vector<1x128xf32>
    %c0_1 = arith.constant 0 : index
    %c0_2 = arith.constant 0 : index
    %1 = vector.load %arg3[%c0_1, %c0_2] : memref<32x128xf32, #tpu.memory_space<vmem>>, vector<32x128xf32>
    %c0_3 = arith.constant 0 : index
    %c0_4 = arith.constant 0 : index
    %2 = vector.load %arg4[%c0_3, %c0_4] : memref<24x32xf32, #tpu.memory_space<vmem>>, vector<24x32xf32>
    %cst = arith.constant dense<0.000000e+00> : vector<24x128xf32>
    %3 = tpu.matmul %2, %1, %cst {dimension_numbers = #tpu.dot_dimension_numbers<[1], [0], [0], [1], [0, 0, 1, 1], [], []>} : vector<24x32xf32>, vector<32x128xf32>, vector<24x128xf32> -> vector<24x128xf32>
    %c0_5 = arith.constant 0 : index
    %c0_6 = arith.constant 0 : index
    %4 = vector.load %arg5[%c0_5, %c0_6] : memref<24x1xf32, #tpu.memory_space<vmem>>, vector<24x1xf32>
    %5 = vector.broadcast %4 : vector<24x1xf32> to vector<24x128xf32>
    %6 = arith.addf %3, %5 : vector<24x128xf32>
    %7 = tpu.iota {dimensions = array<i32: 0>} : vector<8x128xi32>
    %c6_i32 = arith.constant 6 : i32
    %8 = vector.broadcast %c6_i32 : i32 to vector<8x128xi32>
    %9 = arith.cmpi slt, %7, %8 : vector<8x128xi32>
    %10 = tpu.iota {dimensions = array<i32: 0>} : vector<8x8xi32>
    %11 = tpu.iota {dimensions = array<i32: 1>} : vector<8x8xi32>
    %12 = arith.cmpi sle, %11, %10 : vector<8x8xi32>
    %13 = arith.extui %12 : vector<8x8xi1> to vector<8x8xi32>
    %14 = arith.sitofp %13 : vector<8x8xi32> to vector<8x8xf32>
    %cst_7 = arith.constant 0.000000e+00 : f32
    %15 = vector.broadcast %cst_7 : f32 to vector<1x128xf32>
    %c0_i32 = arith.constant 0 : i32
    %16 = vector.broadcast %c0_i32 : i32 to vector<1x128xi32>
    %17 = vector.extract_strided_slice %6 {offsets = [0, 0], sizes = [8, 128], strides = [1, 1]} : vector<24x128xf32> to vector<8x128xf32>
    %cst_8 = arith.constant dense<0xFF800000> : vector<128xf32>
    %18 = vector.multi_reduction <maximumf>, %17, %cst_8 [0] : vector<8x128xf32> to vector<128xf32>
    %19 = vector.shape_cast %18 : vector<128xf32> to vector<1x128xf32>
    %20 = vector.broadcast %19 : vector<1x128xf32> to vector<8x128xf32>
    %21 = arith.subf %17, %20 : vector<8x128xf32>
    %22 = math.exp %21 : vector<8x128xf32>
    %cst_9 = arith.constant dense<0.000000e+00> : vector<128xf32>
    %23 = vector.multi_reduction <add>, %22, %cst_9 [0] : vector<8x128xf32> to vector<128xf32>
    %24 = vector.shape_cast %23 : vector<128xf32> to vector<1x128xf32>
    %25 = vector.broadcast %24 : vector<1x128xf32> to vector<8x128xf32>
    %26 = arith.divf %22, %25 : vector<8x128xf32>
    %cst_10 = arith.constant 9.99999997E-7 : f32
    %cst_11 = arith.constant 0.999998986 : f32
    %27 = vector.broadcast %cst_10 : f32 to vector<8x128xf32>
    %28 = arith.maximumf %27, %26 : vector<8x128xf32>
    %29 = vector.broadcast %cst_11 : f32 to vector<8x128xf32>
    %30 = arith.minimumf %29, %28 : vector<8x128xf32>
    %31 = math.log %30 : vector<8x128xf32>
    %cst_12 = arith.constant dense<0xFF800000> : vector<128xf32>
    %32 = vector.multi_reduction <maximumf>, %30, %cst_12 [0] : vector<8x128xf32> to vector<128xf32>
    %33 = vector.shape_cast %32 : vector<128xf32> to vector<1x128xf32>
    %34 = vector.broadcast %33 : vector<1x128xf32> to vector<8x128xf32>
    %35 = arith.cmpf oge, %30, %34 : vector<8x128xf32>
    %c8_i32 = arith.constant 8 : i32
    %36 = vector.broadcast %c8_i32 : i32 to vector<8x128xi32>
    %37 = arith.select %35, %7, %36 : vector<8x128xi1>, vector<8x128xi32>
    %cst_13 = arith.constant dense<2147483647> : vector<128xi32>
    %38 = vector.multi_reduction <minsi>, %37, %cst_13 [0] : vector<8x128xi32> to vector<128xi32>
    %39 = vector.shape_cast %38 : vector<128xi32> to vector<1x128xi32>
    %cst_14 = arith.constant 0.000000e+00 : f32
    %40 = vector.broadcast %cst_14 : f32 to vector<8x128xf32>
    %41 = arith.select %9, %30, %40 : vector<8x128xi1>, vector<8x128xf32>
    %cst_15 = arith.constant dense<0.000000e+00> : vector<8x128xf32>
    %42 = tpu.matmul %14, %41, %cst_15 {dimension_numbers = #tpu.dot_dimension_numbers<[1], [0], [0], [1], [0, 0, 1, 1], [], []>} : vector<8x8xf32>, vector<8x128xf32>, vector<8x128xf32> -> vector<8x128xf32>
    %43 = vector.extract_strided_slice %42 {offsets = [5, 0], sizes = [1, 128], strides = [1, 1]} : vector<8x128xf32> to vector<1x128xf32>
    %c0_16 = arith.constant 0 : index
    %c0_17 = arith.constant 0 : index
    %44 = vector.load %arg2[%c0_16, %c0_17] : memref<3x128xf32, #tpu.memory_space<vmem>>, vector<1x128xf32>
    %45 = arith.mulf %44, %43 : vector<1x128xf32>
    %46 = vector.broadcast %45 : vector<1x128xf32> to vector<8x128xf32>
    %47 = arith.cmpf olt, %42, %46 : vector<8x128xf32>
    %48 = arith.extui %47 : vector<8x128xi1> to vector<8x128xi32>
    %cst_18 = arith.constant dense<0> : vector<128xi32>
    %49 = vector.multi_reduction <add>, %48, %cst_18 [0] : vector<8x128xi32> to vector<128xi32>
    %50 = vector.shape_cast %49 : vector<128xi32> to vector<1x128xi32>
    %c5_i32 = arith.constant 5 : i32
    %51 = vector.broadcast %c5_i32 : i32 to vector<1x128xi32>
    %52 = arith.minsi %50, %51 : vector<1x128xi32>
    %53 = vector.broadcast %52 : vector<1x128xi32> to vector<8x128xi32>
    %54 = arith.cmpi eq, %7, %53 : vector<8x128xi32>
    %cst_19 = arith.constant 0.000000e+00 : f32
    %55 = vector.broadcast %cst_19 : f32 to vector<8x128xf32>
    %56 = arith.select %54, %31, %55 : vector<8x128xi1>, vector<8x128xf32>
    %cst_20 = arith.constant dense<0.000000e+00> : vector<128xf32>
    %57 = vector.multi_reduction <add>, %56, %cst_20 [0] : vector<8x128xf32> to vector<128xf32>
    %58 = vector.shape_cast %57 : vector<128xf32> to vector<1x128xf32>
    %cst_21 = arith.constant 0.000000e+00 : f32
    %59 = vector.broadcast %cst_21 : f32 to vector<8x128xf32>
    %60 = arith.subf %59, %30 : vector<8x128xf32>
    %61 = arith.mulf %60, %31 : vector<8x128xf32>
    %cst_22 = arith.constant 0.000000e+00 : f32
    %62 = vector.broadcast %cst_22 : f32 to vector<8x128xf32>
    %63 = arith.select %9, %61, %62 : vector<8x128xi1>, vector<8x128xf32>
    %cst_23 = arith.constant dense<0.000000e+00> : vector<128xf32>
    %64 = vector.multi_reduction <add>, %63, %cst_23 [0] : vector<8x128xf32> to vector<128xf32>
    %65 = vector.shape_cast %64 : vector<128xf32> to vector<1x128xf32>
    %66 = arith.addf %15, %65 : vector<1x128xf32>
    %67 = arith.cmpi eq, %39, %52 : vector<1x128xi32>
    %68 = arith.extui %67 : vector<1x128xi1> to vector<1x128xi32>
    %69 = arith.addi %16, %68 : vector<1x128xi32>
    %70 = vector.extract_strided_slice %6 {offsets = [8, 0], sizes = [8, 128], strides = [1, 1]} : vector<24x128xf32> to vector<8x128xf32>
    %cst_24 = arith.constant dense<0xFF800000> : vector<128xf32>
    %71 = vector.multi_reduction <maximumf>, %70, %cst_24 [0] : vector<8x128xf32> to vector<128xf32>
    %72 = vector.shape_cast %71 : vector<128xf32> to vector<1x128xf32>
    %73 = vector.broadcast %72 : vector<1x128xf32> to vector<8x128xf32>
    %74 = arith.subf %70, %73 : vector<8x128xf32>
    %75 = math.exp %74 : vector<8x128xf32>
    %cst_25 = arith.constant dense<0.000000e+00> : vector<128xf32>
    %76 = vector.multi_reduction <add>, %75, %cst_25 [0] : vector<8x128xf32> to vector<128xf32>
    %77 = vector.shape_cast %76 : vector<128xf32> to vector<1x128xf32>
    %78 = vector.broadcast %77 : vector<1x128xf32> to vector<8x128xf32>
    %79 = arith.divf %75, %78 : vector<8x128xf32>
    %cst_26 = arith.constant 9.99999997E-7 : f32
    %cst_27 = arith.constant 0.999998986 : f32
    %80 = vector.broadcast %cst_26 : f32 to vector<8x128xf32>
    %81 = arith.maximumf %80, %79 : vector<8x128xf32>
    %82 = vector.broadcast %cst_27 : f32 to vector<8x128xf32>
    %83 = arith.minimumf %82, %81 : vector<8x128xf32>
    %84 = math.log %83 : vector<8x128xf32>
    %cst_28 = arith.constant dense<0xFF800000> : vector<128xf32>
    %85 = vector.multi_reduction <maximumf>, %83, %cst_28 [0] : vector<8x128xf32> to vector<128xf32>
    %86 = vector.shape_cast %85 : vector<128xf32> to vector<1x128xf32>
    %87 = vector.broadcast %86 : vector<1x128xf32> to vector<8x128xf32>
    %88 = arith.cmpf oge, %83, %87 : vector<8x128xf32>
    %c8_i32_29 = arith.constant 8 : i32
    %89 = vector.broadcast %c8_i32_29 : i32 to vector<8x128xi32>
    %90 = arith.select %88, %7, %89 : vector<8x128xi1>, vector<8x128xi32>
    %cst_30 = arith.constant dense<2147483647> : vector<128xi32>
    %91 = vector.multi_reduction <minsi>, %90, %cst_30 [0] : vector<8x128xi32> to vector<128xi32>
    %92 = vector.shape_cast %91 : vector<128xi32> to vector<1x128xi32>
    %cst_31 = arith.constant 0.000000e+00 : f32
    %93 = vector.broadcast %cst_31 : f32 to vector<8x128xf32>
    %94 = arith.select %9, %83, %93 : vector<8x128xi1>, vector<8x128xf32>
    %cst_32 = arith.constant dense<0.000000e+00> : vector<8x128xf32>
    %95 = tpu.matmul %14, %94, %cst_32 {dimension_numbers = #tpu.dot_dimension_numbers<[1], [0], [0], [1], [0, 0, 1, 1], [], []>} : vector<8x8xf32>, vector<8x128xf32>, vector<8x128xf32> -> vector<8x128xf32>
    %96 = vector.extract_strided_slice %95 {offsets = [5, 0], sizes = [1, 128], strides = [1, 1]} : vector<8x128xf32> to vector<1x128xf32>
    %c1 = arith.constant 1 : index
    %c0_33 = arith.constant 0 : index
    %97 = vector.load %arg2[%c1, %c0_33] : memref<3x128xf32, #tpu.memory_space<vmem>>, vector<1x128xf32>
    %98 = arith.mulf %97, %96 : vector<1x128xf32>
    %99 = vector.broadcast %98 : vector<1x128xf32> to vector<8x128xf32>
    %100 = arith.cmpf olt, %95, %99 : vector<8x128xf32>
    %101 = arith.extui %100 : vector<8x128xi1> to vector<8x128xi32>
    %cst_34 = arith.constant dense<0> : vector<128xi32>
    %102 = vector.multi_reduction <add>, %101, %cst_34 [0] : vector<8x128xi32> to vector<128xi32>
    %103 = vector.shape_cast %102 : vector<128xi32> to vector<1x128xi32>
    %c5_i32_35 = arith.constant 5 : i32
    %104 = vector.broadcast %c5_i32_35 : i32 to vector<1x128xi32>
    %105 = arith.minsi %103, %104 : vector<1x128xi32>
    %106 = vector.broadcast %105 : vector<1x128xi32> to vector<8x128xi32>
    %107 = arith.cmpi eq, %7, %106 : vector<8x128xi32>
    %cst_36 = arith.constant 0.000000e+00 : f32
    %108 = vector.broadcast %cst_36 : f32 to vector<8x128xf32>
    %109 = arith.select %107, %84, %108 : vector<8x128xi1>, vector<8x128xf32>
    %cst_37 = arith.constant dense<0.000000e+00> : vector<128xf32>
    %110 = vector.multi_reduction <add>, %109, %cst_37 [0] : vector<8x128xf32> to vector<128xf32>
    %111 = vector.shape_cast %110 : vector<128xf32> to vector<1x128xf32>
    %cst_38 = arith.constant 0.000000e+00 : f32
    %112 = vector.broadcast %cst_38 : f32 to vector<8x128xf32>
    %113 = arith.subf %112, %83 : vector<8x128xf32>
    %114 = arith.mulf %113, %84 : vector<8x128xf32>
    %cst_39 = arith.constant 0.000000e+00 : f32
    %115 = vector.broadcast %cst_39 : f32 to vector<8x128xf32>
    %116 = arith.select %9, %114, %115 : vector<8x128xi1>, vector<8x128xf32>
    %cst_40 = arith.constant dense<0.000000e+00> : vector<128xf32>
    %117 = vector.multi_reduction <add>, %116, %cst_40 [0] : vector<8x128xf32> to vector<128xf32>
    %118 = vector.shape_cast %117 : vector<128xf32> to vector<1x128xf32>
    %119 = arith.addf %66, %118 : vector<1x128xf32>
    %120 = arith.cmpi eq, %92, %105 : vector<1x128xi32>
    %121 = arith.extui %120 : vector<1x128xi1> to vector<1x128xi32>
    %122 = arith.addi %69, %121 : vector<1x128xi32>
    %123 = vector.extract_strided_slice %6 {offsets = [16, 0], sizes = [8, 128], strides = [1, 1]} : vector<24x128xf32> to vector<8x128xf32>
    %cst_41 = arith.constant dense<0xFF800000> : vector<128xf32>
    %124 = vector.multi_reduction <maximumf>, %123, %cst_41 [0] : vector<8x128xf32> to vector<128xf32>
    %125 = vector.shape_cast %124 : vector<128xf32> to vector<1x128xf32>
    %126 = vector.broadcast %125 : vector<1x128xf32> to vector<8x128xf32>
    %127 = arith.subf %123, %126 : vector<8x128xf32>
    %128 = math.exp %127 : vector<8x128xf32>
    %cst_42 = arith.constant dense<0.000000e+00> : vector<128xf32>
    %129 = vector.multi_reduction <add>, %128, %cst_42 [0] : vector<8x128xf32> to vector<128xf32>
    %130 = vector.shape_cast %129 : vector<128xf32> to vector<1x128xf32>
    %131 = vector.broadcast %130 : vector<1x128xf32> to vector<8x128xf32>
    %132 = arith.divf %128, %131 : vector<8x128xf32>
    %cst_43 = arith.constant 9.99999997E-7 : f32
    %cst_44 = arith.constant 0.999998986 : f32
    %133 = vector.broadcast %cst_43 : f32 to vector<8x128xf32>
    %134 = arith.maximumf %133, %132 : vector<8x128xf32>
    %135 = vector.broadcast %cst_44 : f32 to vector<8x128xf32>
    %136 = arith.minimumf %135, %134 : vector<8x128xf32>
    %137 = math.log %136 : vector<8x128xf32>
    %cst_45 = arith.constant dense<0xFF800000> : vector<128xf32>
    %138 = vector.multi_reduction <maximumf>, %136, %cst_45 [0] : vector<8x128xf32> to vector<128xf32>
    %139 = vector.shape_cast %138 : vector<128xf32> to vector<1x128xf32>
    %140 = vector.broadcast %139 : vector<1x128xf32> to vector<8x128xf32>
    %141 = arith.cmpf oge, %136, %140 : vector<8x128xf32>
    %c8_i32_46 = arith.constant 8 : i32
    %142 = vector.broadcast %c8_i32_46 : i32 to vector<8x128xi32>
    %143 = arith.select %141, %7, %142 : vector<8x128xi1>, vector<8x128xi32>
    %cst_47 = arith.constant dense<2147483647> : vector<128xi32>
    %144 = vector.multi_reduction <minsi>, %143, %cst_47 [0] : vector<8x128xi32> to vector<128xi32>
    %145 = vector.shape_cast %144 : vector<128xi32> to vector<1x128xi32>
    %cst_48 = arith.constant 0.000000e+00 : f32
    %146 = vector.broadcast %cst_48 : f32 to vector<8x128xf32>
    %147 = arith.select %9, %136, %146 : vector<8x128xi1>, vector<8x128xf32>
    %cst_49 = arith.constant dense<0.000000e+00> : vector<8x128xf32>
    %148 = tpu.matmul %14, %147, %cst_49 {dimension_numbers = #tpu.dot_dimension_numbers<[1], [0], [0], [1], [0, 0, 1, 1], [], []>} : vector<8x8xf32>, vector<8x128xf32>, vector<8x128xf32> -> vector<8x128xf32>
    %149 = vector.extract_strided_slice %148 {offsets = [5, 0], sizes = [1, 128], strides = [1, 1]} : vector<8x128xf32> to vector<1x128xf32>
    %c2 = arith.constant 2 : index
    %c0_50 = arith.constant 0 : index
    %150 = vector.load %arg2[%c2, %c0_50] : memref<3x128xf32, #tpu.memory_space<vmem>>, vector<1x128xf32>
    %151 = arith.mulf %150, %149 : vector<1x128xf32>
    %152 = vector.broadcast %151 : vector<1x128xf32> to vector<8x128xf32>
    %153 = arith.cmpf olt, %148, %152 : vector<8x128xf32>
    %154 = arith.extui %153 : vector<8x128xi1> to vector<8x128xi32>
    %cst_51 = arith.constant dense<0> : vector<128xi32>
    %155 = vector.multi_reduction <add>, %154, %cst_51 [0] : vector<8x128xi32> to vector<128xi32>
    %156 = vector.shape_cast %155 : vector<128xi32> to vector<1x128xi32>
    %c5_i32_52 = arith.constant 5 : i32
    %157 = vector.broadcast %c5_i32_52 : i32 to vector<1x128xi32>
    %158 = arith.minsi %156, %157 : vector<1x128xi32>
    %159 = vector.broadcast %158 : vector<1x128xi32> to vector<8x128xi32>
    %160 = arith.cmpi eq, %7, %159 : vector<8x128xi32>
    %cst_53 = arith.constant 0.000000e+00 : f32
    %161 = vector.broadcast %cst_53 : f32 to vector<8x128xf32>
    %162 = arith.select %160, %137, %161 : vector<8x128xi1>, vector<8x128xf32>
    %cst_54 = arith.constant dense<0.000000e+00> : vector<128xf32>
    %163 = vector.multi_reduction <add>, %162, %cst_54 [0] : vector<8x128xf32> to vector<128xf32>
    %164 = vector.shape_cast %163 : vector<128xf32> to vector<1x128xf32>
    %cst_55 = arith.constant 0.000000e+00 : f32
    %165 = vector.broadcast %cst_55 : f32 to vector<8x128xf32>
    %166 = arith.subf %165, %136 : vector<8x128xf32>
    %167 = arith.mulf %166, %137 : vector<8x128xf32>
    %cst_56 = arith.constant 0.000000e+00 : f32
    %168 = vector.broadcast %cst_56 : f32 to vector<8x128xf32>
    %169 = arith.select %9, %167, %168 : vector<8x128xi1>, vector<8x128xf32>
    %cst_57 = arith.constant dense<0.000000e+00> : vector<128xf32>
    %170 = vector.multi_reduction <add>, %169, %cst_57 [0] : vector<8x128xf32> to vector<128xf32>
    %171 = vector.shape_cast %170 : vector<128xf32> to vector<1x128xf32>
    %172 = arith.addf %119, %171 : vector<1x128xf32>
    %173 = arith.cmpi eq, %145, %158 : vector<1x128xi32>
    %174 = arith.extui %173 : vector<1x128xi1> to vector<1x128xi32>
    %175 = arith.addi %122, %174 : vector<1x128xi32>
    %cst_58 = arith.constant 0.000000e+00 : f32
    %176 = vector.broadcast %cst_58 : f32 to vector<1x128xf32>
    %177 = arith.cmpf ogt, %0, %176 : vector<1x128xf32>
    %c0_i32_59 = arith.constant 0 : i32
    %178 = vector.broadcast %c0_i32_59 : i32 to vector<1x128xi32>
    %179 = arith.select %177, %175, %178 : vector<1x128xi1>, vector<1x128xi32>
    %180 = tpu.concatenate %52, %105, %158, %179 in 0 : vector<1x128xi32>, vector<1x128xi32>, vector<1x128xi32>, vector<1x128xi32> -> vector<4x128xi32>
    %c0_60 = arith.constant 0 : index
    %c0_61 = arith.constant 0 : index
    %181 = vector.load %arg6[%c0_60, %c0_61] : memref<4x128xi32, #tpu.memory_space<vmem>>, vector<4x128xi32>
    tpu.vector_store %arg6[%c0_60, %c0_61], %180 {strides = array<i32>} : memref<4x128xi32, #tpu.memory_space<vmem>>, vector<4x128xi32>,
    %182 = arith.mulf %172, %0 : vector<1x128xf32>
    %183 = tpu.concatenate %58, %111, %164, %182 in 0 : vector<1x128xf32>, vector<1x128xf32>, vector<1x128xf32>, vector<1x128xf32> -> vector<4x128xf32>
    %c0_62 = arith.constant 0 : index
    %c0_63 = arith.constant 0 : index
    %184 = vector.load %arg7[%c0_62, %c0_63] : memref<4x128xf32, #tpu.memory_space<vmem>>, vector<4x128xf32>
    tpu.vector_store %arg7[%c0_62, %c0_63], %183 {strides = array<i32>} : memref<4x128xf32, #tpu.memory_space<vmem>>, vector<4x128xf32>,
    return
  }
  func.func @transform_0(%arg0: i32) -> (i32, i32) {
    %c0_i32 = arith.constant 0 : i32
    %c0_i32_0 = arith.constant 0 : i32
    return %c0_i32, %arg0 : i32, i32
  }
  func.func @transform_1(%arg0: i32) -> (i32, i32) {
    %c0_i32 = arith.constant 0 : i32
    %c0_i32_0 = arith.constant 0 : i32
    return %c0_i32, %arg0 : i32, i32
  }
  func.func @transform_2(%arg0: i32) -> (i32, i32) {
    %c0_i32 = arith.constant 0 : i32
    %c0_i32_0 = arith.constant 0 : i32
    return %c0_i32, %arg0 : i32, i32
  }
  func.func @transform_3(%arg0: i32) -> (i32, i32) {
    %c0_i32 = arith.constant 0 : i32
    %c0_i32_0 = arith.constant 0 : i32
    %c0_i32_1 = arith.constant 0 : i32
    return %c0_i32, %c0_i32_0 : i32, i32
  }
  func.func @transform_4(%arg0: i32) -> (i32, i32) {
    %c0_i32 = arith.constant 0 : i32
    %c0_i32_0 = arith.constant 0 : i32
    %c0_i32_1 = arith.constant 0 : i32
    return %c0_i32, %c0_i32_0 : i32, i32
  }
  func.func @transform_5(%arg0: i32) -> (i32, i32) {
    %c0_i32 = arith.constant 0 : i32
    %c0_i32_0 = arith.constant 0 : i32
    return %c0_i32, %arg0 : i32, i32
  }
  func.func @transform_6(%arg0: i32) -> (i32, i32) {
    %c0_i32 = arith.constant 0 : i32
    %c0_i32_0 = arith.constant 0 : i32
    return %c0_i32, %arg0 : i32, i32
  }
}

</mosaic_0001>

<llo_original>
// kernel: tpu_custom_call.1
$region0: #{tpu_custom_call.1}
  #allocation0 [shape = 'u32[]', space=smem, size = 0x4, offset = 0x4, fixed_abs, tag = 'smem constant byte address 0x4 - core index']
  #allocation1 [shape = 'u32[144,128]{1,0:T(1,128)}', space=vmem, size = 0x12000, scoped, tag = 'internal scratch']
  %s0 = inlined_call_operand.vmem [shape: f32[1,128], index: 0, kind: input, shape index: {}]
  %s1 = inlined_call_operand.vmem [shape: f32[3,128], index: 1, kind: input, shape index: {}]
  %s2 = inlined_call_operand.hbm [shape: f32[32,128], index: 2, kind: input, shape index: {}]
  %s3 = inlined_call_operand.vmem [shape: f32[24,32], index: 3, kind: input, shape index: {}]
  %s4 = inlined_call_operand.vmem [shape: f32[24,1], index: 4, kind: input, shape index: {}]
  %s5 = inlined_call_operand.hbm [shape: s32[4,128], index: 5, kind: output, shape index: {0}]
  %s6 = inlined_call_operand.hbm [shape: f32[4,128], index: 6, kind: output, shape index: {1}]
  %7 = xla_tuple %s5, %s6
  %s8 = sld [smem:[#allocation0]]
  $region42: #{tpu_custom_call.1} parent=0
    _
  %s10 = ssub.s32 1, %s8
  %s11 = scalar_select 0, %s10, %s8
  $region1: #{tpu_custom_call.1} parent=0
    #allocation2 [shape = 'u8[16384]{0}', space=vmem, size = 0x4000, scoped, tag = 'input window, operand 2, single buffered']
    #allocation3 [shape = 's32[1]{0}', space=sflag, size = 0x4, scoped, tag = 'scoped memory for tpu_custom_call.1']
    #allocation4 [shape = 's32[1]{0}', space=sflag, size = 0x4, scoped, tag = 'scoped memory for tpu_custom_call.1']
    #allocation5 [shape = 'u8[2048]{0}', space=vmem, size = 0x800, scoped, tag = 'output window, operand 0, single buffered']
    #allocation6 [shape = 'u8[2048]{0}', space=vmem, size = 0x800, scoped, tag = 'output window, operand 1, single buffered']
    #allocation7 [shape = 's32[1]{0}', space=sflag, size = 0x4, scoped, tag = 'scoped memory for tpu_custom_call.1']
    %12 = vsyncpa [#allocation3], 0
    %13 = vsyncpa [#allocation4], 0
    %14 = vsyncpa [#allocation7], 0
    // Predicated region
    $region2: #{tpu_custom_call.1} parent=1 // pred_check
      _
    $region3: #{tpu_custom_call.1} parent=1 // pred_check_branch
      %16 = sbr.rel (0) target = $region5
    $region4: #{tpu_custom_call.1} parent=1 // pred_region
      _
    $region5: #{tpu_custom_call.1} parent=1 // pred_fallthru
      _
    // Predicated region
    $region6: #{tpu_custom_call.1} parent=1 // pred_check
      _
    $region7: #{tpu_custom_call.1} parent=1 // pred_check_branch
      %18 = sbr.rel (0) target = $region9
    $region8: #{tpu_custom_call.1} parent=1 // pred_region
      _
    $region9: #{tpu_custom_call.1} parent=1 // pred_fallthru
      _
    // Predicated region
    $region10: #{tpu_custom_call.1} parent=1 // pred_check
      _
    $region11: #{tpu_custom_call.1} parent=1 // pred_check_branch
      %20 = sbr.rel (0) target = $region13
    $region12: #{tpu_custom_call.1} parent=1 // pred_region
      %s22 = ssub.s32 512, 512
      %23 = vsyncadd [#allocation3], %s22
      %s24 = sshll.u32 [#allocation2], 4
      %s25 = int_to_ptr.vmem [resolvable:$true] %s24
      %30 = dma.hbm_to_vmem [thread:$0]  %s2, 512, %s25, [#allocation3], 128, 128, 8
    $region13: #{tpu_custom_call.1} parent=1 // pred_fallthru
      _
    // Predicated region
    $region14: #{tpu_custom_call.1} parent=1 // pred_check
      _
    $region15: #{tpu_custom_call.1} parent=1 // pred_check_branch
      %32 = sbr.rel (0) target = $region17
    $region16: #{tpu_custom_call.1} parent=1 // pred_region
      _
    $region17: #{tpu_custom_call.1} parent=1 // pred_fallthru
      _
    // Predicated region
    $region18: #{tpu_custom_call.1} parent=1 // pred_check
      _
    $region19: #{tpu_custom_call.1} parent=1 // pred_check_branch
      %34 = sbr.rel (0) target = $region21
    $region20: #{tpu_custom_call.1} parent=1 // pred_region
      _
    $region21: #{tpu_custom_call.1} parent=1 // pred_fallthru
      _
    // Predicated region
    $region22: #{tpu_custom_call.1} parent=1 // pred_check
      _
    $region23: #{tpu_custom_call.1} parent=1 // pred_check_branch
      %36 = sbr.rel (0) target = $region25
    $region24: #{tpu_custom_call.1} parent=1 // pred_region
      %37 = dma.done [#allocation3], 512
    $region25: #{tpu_custom_call.1} parent=1 // pred_fallthru
      _
    %v38 = vld [vmem:[%s0] sm:$0x1]
    %v39 = vld [vmem:[#allocation2] sm:$0xff]
    %v40 = vld [vmem:[#allocation2 + $0x8] sm:$0xff]
    %v41 = vld [vmem:[#allocation2 + $0x10] sm:$0xff]
    %v42 = vld [vmem:[#allocation2 + $0x18] sm:$0xff]
    %v43 = vld [vmem:[%s3] sm:$0xff]
    %v44 = vld [vmem:[%s3 + $0x8] sm:$0xff]
    %v45 = vld [vmem:[%s3 + $0x10] sm:$0xff]
    %v46 = vld [vmem:[%s4] sm:$0xff]
    %v47 = vld [vmem:[%s4 + $0x8] sm:$0xff]
    %v48 = vld [vmem:[%s4 + $0x10] sm:$0xff]
    %50 = vset.pattern.permute.xlu0 0
    %51 = vperm.xlu0 %50, %v46
    %v52 = vpop.permute.xlu0 %51
    %55 = vset.pattern.permute.xlu0 0
    %56 = vperm.xlu0 %55, %v47
    %v57 = vpop.permute.xlu0 %56
    %60 = vset.pattern.permute.xlu0 0
    %61 = vperm.xlu0 %60, %v48
    %v62 = vpop.permute.xlu0 %61
    %vm64 = vcmask 261120
    %v66 = vsel %vm64, %v43, 0
    %v69 = vsel %vm64, %v44, 0
    %v72 = vsel %vm64, %v45, 0
    %74 = vmatprep.subr.mxu0 0.0
    %75 = vmatpush1.msra.mxu0 0.0
    %76 = vmatprep.subr.mxu0 0.0
    %77 = vmatpush1.msra.mxu0 0.0
    %78 = vmatprep.subr.mxu0 0.0
    %79 = vmatpush1.msra.mxu0 0.0
    %80 = vmatprep.subr.mxu0 0.0
    %81 = vmatpush1.msra.mxu0 0.0
    %82 = vmatprep.subr.mxu0 0.0
    %83 = vmatpush1.msra.mxu0 0.0
    %84 = vmatprep.subr.mxu0 0.0
    %85 = vmatpush1.msra.mxu0 0.0
    %86 = vmatprep.subr.mxu0 0.0
    %87 = vmatpush1.msra.mxu0 0.0
    %88 = vmatprep.subr.mxu0 0.0
    %89 = vmatpush1.msra.mxu0 0.0
    %90 = vmatprep.subr.mxu0 0.0
    %91 = vmatpush1.msra.mxu0 0.0
    %92 = vmatprep.subr.mxu0 0.0
    %93 = vmatpush1.msra.mxu0 0.0
    %94 = vmatprep.subr.mxu0 0.0
    %95 = vmatpush1.msra.mxu0 0.0
    %96 = vmatprep.subr.mxu0 0.0
    %97 = vmatpush1.msra.mxu0 0.0
    %98 = vmatprep.subr.mxu0 0.0
    %99 = vmatpush1.msra.mxu0 %v42
    %100 = vmatprep.subr.mxu0 0.0
    %101 = vmatpush1.msra.mxu0 %v41
    %102 = vmatprep.subr.mxu0 0.0
    %103 = vmatpush1.msra.mxu0 %v40
    %104 = vmatprep.subr.mxu0 0.0
    %105 = vmatpush1.msra.mxu0 %v39
    %106 = vmatprep.subr.mxu0 0.0
    %107 = vmatpush2.msra.mxu0 0.0
    %108 = vmatprep.subr.mxu0 0.0
    %109 = vmatpush2.msra.mxu0 0.0
    %110 = vmatprep.subr.mxu0 0.0
    %111 = vmatpush2.msra.mxu0 0.0
    %112 = vmatprep.subr.mxu0 0.0
    %113 = vmatpush2.msra.mxu0 0.0
    %114 = vmatprep.subr.mxu0 0.0
    %115 = vmatpush2.msra.mxu0 0.0
    %116 = vmatprep.subr.mxu0 0.0
    %117 = vmatpush2.msra.mxu0 0.0
    %118 = vmatprep.subr.mxu0 0.0
    %119 = vmatpush2.msra.mxu0 0.0
    %120 = vmatprep.subr.mxu0 0.0
    %121 = vmatpush2.msra.mxu0 0.0
    %122 = vmatprep.subr.mxu0 0.0
    %123 = vmatpush2.msra.mxu0 0.0
    %124 = vmatprep.subr.mxu0 0.0
    %125 = vmatpush2.msra.mxu0 0.0
    %126 = vmatprep.subr.mxu0 0.0
    %127 = vmatpush2.msra.mxu0 0.0
    %128 = vmatprep.subr.mxu0 0.0
    %129 = vmatpush2.msra.mxu0 0.0
    %130 = vmatprep.subr.mxu0 0.0
    %131 = vmatpush2.msra.mxu0 0.0
    %132 = vmatprep.subr.mxu0 0.0
    %133 = vmatpush2.msra.mxu0 0.0
    %134 = vmatprep.subr.mxu0 0.0
    %135 = vmatpush2.msra.mxu0 0.0
    %136 = vmatprep.subr.mxu0 0.0
    %137 = vmatpush2.msra.mxu0 0.0
    %138 = vmatprep.mubr.f32.mxu0 0.0
    %139 = vmatmul.mubr.f32.gmra.mxu0 %v66
    %v140 = vpop.f32.mrf.mxu0
    %v141 = vadd.f32 %v52, %v140
    %v142 = vpop.f32.mrf.mxu0
    %143 = vmatprep.mubr.f32.mxu0 0.0
    %144 = vmatmul.mubr.f32.gmra.mxu0 %v69
    %v145 = vpop.f32.mrf.mxu0
    %v146 = vadd.f32 %v57, %v145
    %v147 = vpop.f32.mrf.mxu0
    %148 = vmatprep.mubr.f32.mxu0 0.0
    %149 = vmatmul.mubr.f32.gmra.mxu0 %v72
    %v150 = vpop.f32.mrf.mxu0
    %v151 = vadd.f32 %v62, %v150
    %v152 = vpop.f32.mrf.mxu0
    %153 = vdwg.mxu0
    %v154 = vlaneseq
    %v155 = vshrl.u32 %v154, 7
    %vm156 = vcmp.lt.s32.totalorder %v155, 6
    %v157 = vlaneseq
    %v158 = vand.u32 %v157, 127
    %vm159 = vcmp.le.s32.totalorder %v158, %v155
    %v160 = vsel %vm159, 1, 0
    %v161 = vcvt.s32.f32 %v160
    %v162 = vrot.slane %v141, 4
    %v163 = vmax.f32 %v141, %v162
    %v164 = vrot.slane %v163, 2
    %v165 = vmax.f32 %v163, %v164
    %v166 = vrot.slane %v165, 1
    %v167 = vmax.f32 %v165, %v166
    %v168 = vsub.f32 %v141, %v167
    %v169 = vmul.f32 %v168, 1.442695
    %v170 = vpow.pop %v169
    %v171 = vrot.slane %v170, 4
    %v172 = vadd.f32 %v170, %v171
    %v173 = vrot.slane %v172, 2
    %v174 = vadd.f32 %v172, %v173
    %v175 = vrot.slane %v174, 1
    %v176 = vadd.f32 %v174, %v175
    %v177 = vrcp.pop %v176
    %v178 = vmul.f32 %v170, %v177
    %v179 = vmax.f32 %v178, 1e-06
    %v180 = vmin.f32 %v179, 0.999999
    %v181 = vlog2.pop %v180
    %v182 = vmul.f32 %v181, 0.6931472
    %v183 = vrot.slane %v180, 4
    %v184 = vmax.f32 %v180, %v183
    %v185 = vrot.slane %v184, 2
    %v186 = vmax.f32 %v184, %v185
    %v187 = vrot.slane %v186, 1
    %v188 = vmax.f32 %v186, %v187
    %vm189 = vcmp.ge.f32.partialorder %v180, %v188
    %v190 = vsel %vm189, %v155, 8
    %v191 = vrot.slane %v190, 4
    %vm192 = vcmp.lt.s32.totalorder %v190, %v191
    %v193 = vsel %vm192, %v190, %v191
    %v194 = vrot.slane %v193, 2
    %vm195 = vcmp.lt.s32.totalorder %v193, %v194
    %v196 = vsel %vm195, %v193, %v194
    %v197 = vrot.slane %v196, 1
    %vm198 = vcmp.lt.s32.totalorder %v196, %v197
    %v199 = vsel %vm198, %v196, %v197
    %v200 = vsel %vm156, %v180, 0.0
    %vm201 = vcmask 64512
    %v203 = vsel %vm201, %v161, 0
    %205 = vmatprep.subr.mxu0 0.0
    %206 = vmatpush1.msra.mxu0 0.0
    %207 = vmatprep.subr.mxu0 0.0
    %208 = vmatpush1.msra.mxu0 0.0
    %209 = vmatprep.subr.mxu0 0.0
    %210 = vmatpush1.msra.mxu0 0.0
    %211 = vmatprep.subr.mxu0 0.0
    %212 = vmatpush1.msra.mxu0 0.0
    %213 = vmatprep.subr.mxu0 0.0
    %214 = vmatpush1.msra.mxu0 0.0
    %215 = vmatprep.subr.mxu0 0.0
    %216 = vmatpush1.msra.mxu0 0.0
    %217 = vmatprep.subr.mxu0 0.0
    %218 = vmatpush1.msra.mxu0 0.0
    %219 = vmatprep.subr.mxu0 0.0
    %220 = vmatpush1.msra.mxu0 0.0
    %221 = vmatprep.subr.mxu0 0.0
    %222 = vmatpush1.msra.mxu0 0.0
    %223 = vmatprep.subr.mxu0 0.0
    %224 = vmatpush1.msra.mxu0 0.0
    %225 = vmatprep.subr.mxu0 0.0
    %226 = vmatpush1.msra.mxu0 0.0
    %227 = vmatprep.subr.mxu0 0.0
    %228 = vmatpush1.msra.mxu0 0.0
    %229 = vmatprep.subr.mxu0 0.0
    %230 = vmatpush1.msra.mxu0 0.0
    %231 = vmatprep.subr.mxu0 0.0
    %232 = vmatpush1.msra.mxu0 0.0
    %233 = vmatprep.subr.mxu0 0.0
    %234 = vmatpush1.msra.mxu0 0.0
    %235 = vmatprep.subr.mxu0 0.0
    %236 = vmatpush1.msra.mxu0 %v200
    %237 = vmatprep.subr.mxu0 0.0
    %238 = vmatpush2.msra.mxu0 0.0
    %239 = vmatprep.subr.mxu0 0.0
    %240 = vmatpush2.msra.mxu0 0.0
    %241 = vmatprep.subr.mxu0 0.0
    %242 = vmatpush2.msra.mxu0 0.0
    %243 = vmatprep.subr.mxu0 0.0
    %244 = vmatpush2.msra.mxu0 0.0
    %245 = vmatprep.subr.mxu0 0.0
    %246 = vmatpush2.msra.mxu0 0.0
    %247 = vmatprep.subr.mxu0 0.0
    %248 = vmatpush2.msra.mxu0 0.0
    %249 = vmatprep.subr.mxu0 0.0
    %250 = vmatpush2.msra.mxu0 0.0
    %251 = vmatprep.subr.mxu0 0.0
    %252 = vmatpush2.msra.mxu0 0.0
    %253 = vmatprep.subr.mxu0 0.0
    %254 = vmatpush2.msra.mxu0 0.0
    %255 = vmatprep.subr.mxu0 0.0
    %256 = vmatpush2.msra.mxu0 0.0
    %257 = vmatprep.subr.mxu0 0.0
    %258 = vmatpush2.msra.mxu0 0.0
    %259 = vmatprep.subr.mxu0 0.0
    %260 = vmatpush2.msra.mxu0 0.0
    %261 = vmatprep.subr.mxu0 0.0
    %262 = vmatpush2.msra.mxu0 0.0
    %263 = vmatprep.subr.mxu0 0.0
    %264 = vmatpush2.msra.mxu0 0.0
    %265 = vmatprep.subr.mxu0 0.0
    %266 = vmatpush2.msra.mxu0 0.0
    %267 = vmatprep.subr.mxu0 0.0
    %268 = vmatpush2.msra.mxu0 0.0
    %269 = vmatprep.mubr.f32.mxu0 0.0
    %270 = vmatmul.mubr.f32.gmra.mxu0 %v203
    %v271 = vpop.f32.mrf.mxu0
    %v272 = vadd.f32 0.0, %v271
    %v273 = vpop.f32.mrf.mxu0
    %274 = vdwg.mxu0
    %v275 = vld [vmem:[%s1] sm:$0x1]
    %v277 = vrot.slane %v272, 5
    %v279 = vmul.f32 %v275, %v277
    %v280 = vlaneseq
    %v281 = vshrl.u32 %v280, 7
    %v282 = vsub.s32 0, %v281
    %v283 = vrot.slane %v279, %v282
    %vm284 = vcmp.lt.f32.partialorder %v272, %v283
    %v285 = vsel %vm284, 1, 0
    %v286 = vrot.slane %v285, 4
    %v287 = vadd.s32 %v285, %v286
    %v288 = vrot.slane %v287, 2
    %v289 = vadd.s32 %v287, %v288
    %v290 = vrot.slane %v289, 1
    %v291 = vadd.s32 %v289, %v290
    %vm292 = vcmp.lt.s32.totalorder %v291, 5
    %v293 = vsel %vm292, %v291, 5
    %vm294 = vcmp.eq.s32.totalorder %v155, %v293
    %v295 = vsel %vm294, %v182, 0.0
    %v296 = vrot.slane %v295, 4
    %v297 = vadd.f32 %v295, %v296
    %v298 = vrot.slane %v297, 2
    %v299 = vadd.f32 %v297, %v298
    %v300 = vrot.slane %v299, 1
    %v301 = vadd.f32 %v299, %v300
    %v302 = vsub.f32 0.0, %v180
    %v303 = vmul.f32 %v302, %v182
    %v304 = vsel %vm156, %v303, 0.0
    %v305 = vrot.slane %v304, 4
    %v306 = vadd.f32 %v304, %v305
    %v307 = vrot.slane %v306, 2
    %v308 = vadd.f32 %v306, %v307
    %v309 = vrot.slane %v308, 1
    %v310 = vadd.f32 %v308, %v309
    %v311 = vadd.f32 %v310, 0.0
    %vm312 = vcmp.eq.s32.totalorder %v199, %v293
    %v313 = vsel %vm312, 1, 0
    %v314 = vrot.slane %v146, 4
    %v315 = vmax.f32 %v146, %v314
    %v316 = vrot.slane %v315, 2
    %v317 = vmax.f32 %v315, %v316
    %v318 = vrot.slane %v317, 1
    %v319 = vmax.f32 %v317, %v318
    %v320 = vsub.f32 %v146, %v319
    %v321 = vmul.f32 %v320, 1.442695
    %v322 = vpow.pop %v321
    %v323 = vrot.slane %v322, 4
    %v324 = vadd.f32 %v322, %v323
    %v325 = vrot.slane %v324, 2
    %v326 = vadd.f32 %v324, %v325
    %v327 = vrot.slane %v326, 1
    %v328 = vadd.f32 %v326, %v327
    %v329 = vrcp.pop %v328
    %v330 = vmul.f32 %v322, %v329
    %v331 = vmax.f32 %v330, 1e-06
    %v332 = vmin.f32 %v331, 0.999999
    %v333 = vlog2.pop %v332
    %v334 = vmul.f32 %v333, 0.6931472
    %v335 = vrot.slane %v332, 4
    %v336 = vmax.f32 %v332, %v335
    %v337 = vrot.slane %v336, 2
    %v338 = vmax.f32 %v336, %v337
    %v339 = vrot.slane %v338, 1
    %v340 = vmax.f32 %v338, %v339
    %vm341 = vcmp.ge.f32.partialorder %v332, %v340
    %v342 = vsel %vm341, %v155, 8
    %v343 = vrot.slane %v342, 4
    %vm344 = vcmp.lt.s32.totalorder %v342, %v343
    %v345 = vsel %vm344, %v342, %v343
    %v346 = vrot.slane %v345, 2
    %vm347 = vcmp.lt.s32.totalorder %v345, %v346
    %v348 = vsel %vm347, %v345, %v346
    %v349 = vrot.slane %v348, 1
    %vm350 = vcmp.lt.s32.totalorder %v348, %v349
    %v351 = vsel %vm350, %v348, %v349
    %v352 = vsel %vm156, %v332, 0.0
    %353 = vmatprep.subr.mxu0 0.0
    %354 = vmatpush1.msra.mxu0 0.0
    %355 = vmatprep.subr.mxu0 0.0
    %356 = vmatpush1.msra.mxu0 0.0
    %357 = vmatprep.subr.mxu0 0.0
    %358 = vmatpush1.msra.mxu0 0.0
    %359 = vmatprep.subr.mxu0 0.0
    %360 = vmatpush1.msra.mxu0 0.0
    %361 = vmatprep.subr.mxu0 0.0
    %362 = vmatpush1.msra.mxu0 0.0
    %363 = vmatprep.subr.mxu0 0.0
    %364 = vmatpush1.msra.mxu0 0.0
    %365 = vmatprep.subr.mxu0 0.0
    %366 = vmatpush1.msra.mxu0 0.0
    %367 = vmatprep.subr.mxu0 0.0
    %368 = vmatpush1.msra.mxu0 0.0
    %369 = vmatprep.subr.mxu0 0.0
    %370 = vmatpush1.msra.mxu0 0.0
    %371 = vmatprep.subr.mxu0 0.0
    %372 = vmatpush1.msra.mxu0 0.0
    %373 = vmatprep.subr.mxu0 0.0
    %374 = vmatpush1.msra.mxu0 0.0
    %375 = vmatprep.subr.mxu0 0.0
    %376 = vmatpush1.msra.mxu0 0.0
    %377 = vmatprep.subr.mxu0 0.0
    %378 = vmatpush1.msra.mxu0 0.0
    %379 = vmatprep.subr.mxu0 0.0
    %380 = vmatpush1.msra.mxu0 0.0
    %381 = vmatprep.subr.mxu0 0.0
    %382 = vmatpush1.msra.mxu0 0.0
    %383 = vmatprep.subr.mxu0 0.0
    %384 = vmatpush1.msra.mxu0 %v352
    %385 = vmatprep.subr.mxu0 0.0
    %386 = vmatpush2.msra.mxu0 0.0
    %387 = vmatprep.subr.mxu0 0.0
    %388 = vmatpush2.msra.mxu0 0.0
    %389 = vmatprep.subr.mxu0 0.0
    %390 = vmatpush2.msra.mxu0 0.0
    %391 = vmatprep.subr.mxu0 0.0
    %392 = vmatpush2.msra.mxu0 0.0
    %393 = vmatprep.subr.mxu0 0.0
    %394 = vmatpush2.msra.mxu0 0.0
    %395 = vmatprep.subr.mxu0 0.0
    %396 = vmatpush2.msra.mxu0 0.0
    %397 = vmatprep.subr.mxu0 0.0
    %398 = vmatpush2.msra.mxu0 0.0
    %399 = vmatprep.subr.mxu0 0.0
    %400 = vmatpush2.msra.mxu0 0.0
    %401 = vmatprep.subr.mxu0 0.0
    %402 = vmatpush2.msra.mxu0 0.0
    %403 = vmatprep.subr.mxu0 0.0
    %404 = vmatpush2.msra.mxu0 0.0
    %405 = vmatprep.subr.mxu0 0.0
    %406 = vmatpush2.msra.mxu0 0.0
    %407 = vmatprep.subr.mxu0 0.0
    %408 = vmatpush2.msra.mxu0 0.0
    %409 = vmatprep.subr.mxu0 0.0
    %410 = vmatpush2.msra.mxu0 0.0
    %411 = vmatprep.subr.mxu0 0.0
    %412 = vmatpush2.msra.mxu0 0.0
    %413 = vmatprep.subr.mxu0 0.0
    %414 = vmatpush2.msra.mxu0 0.0
    %415 = vmatprep.subr.mxu0 0.0
    %416 = vmatpush2.msra.mxu0 0.0
    %417 = vmatprep.mubr.f32.mxu0 0.0
    %418 = vmatmul.mubr.f32.gmra.mxu0 %v203
    %v419 = vpop.f32.mrf.mxu0
    %v420 = vadd.f32 0.0, %v419
    %v421 = vpop.f32.mrf.mxu0
    %422 = vdwg.mxu0
    %v423 = vld [vmem:[%s1 + $0x1] sm:$0x1]
    %v425 = vrot.slane %v420, 5
    %v427 = vmul.f32 %v423, %v425
    %v428 = vlaneseq
    %v429 = vshrl.u32 %v428, 7
    %v430 = vsub.s32 0, %v429
    %v431 = vrot.slane %v427, %v430
    %vm432 = vcmp.lt.f32.partialorder %v420, %v431
    %v433 = vsel %vm432, 1, 0
    %v434 = vrot.slane %v433, 4
    %v435 = vadd.s32 %v433, %v434
    %v436 = vrot.slane %v435, 2
    %v437 = vadd.s32 %v435, %v436
    %v438 = vrot.slane %v437, 1
    %v439 = vadd.s32 %v437, %v438
    %vm440 = vcmp.lt.s32.totalorder %v439, 5
    %v441 = vsel %vm440, %v439, 5
    %vm442 = vcmp.eq.s32.totalorder %v155, %v441
    %v443 = vsel %vm442, %v334, 0.0
    %v444 = vrot.slane %v443, 4
    %v445 = vadd.f32 %v443, %v444
    %v446 = vrot.slane %v445, 2
    %v447 = vadd.f32 %v445, %v446
    %v448 = vrot.slane %v447, 1
    %v449 = vadd.f32 %v447, %v448
    %v450 = vsub.f32 0.0, %v332
    %v451 = vmul.f32 %v450, %v334
    %v452 = vsel %vm156, %v451, 0.0
    %v453 = vrot.slane %v452, 4
    %v454 = vadd.f32 %v452, %v453
    %v455 = vrot.slane %v454, 2
    %v456 = vadd.f32 %v454, %v455
    %v457 = vrot.slane %v456, 1
    %v458 = vadd.f32 %v456, %v457
    %v459 = vadd.f32 %v311, %v458
    %vm460 = vcmp.eq.s32.totalorder %v351, %v441
    %v461 = vsel %vm460, 1, 0
    %v462 = vadd.s32 %v313, %v461
    %v463 = vrot.slane %v151, 4
    %v464 = vmax.f32 %v151, %v463
    %v465 = vrot.slane %v464, 2
    %v466 = vmax.f32 %v464, %v465
    %v467 = vrot.slane %v466, 1
    %v468 = vmax.f32 %v466, %v467
    %v469 = vsub.f32 %v151, %v468
    %v470 = vmul.f32 %v469, 1.442695
    %v471 = vpow.pop %v470
    %v472 = vrot.slane %v471, 4
    %v473 = vadd.f32 %v471, %v472
    %v474 = vrot.slane %v473, 2
    %v475 = vadd.f32 %v473, %v474
    %v476 = vrot.slane %v475, 1
    %v477 = vadd.f32 %v475, %v476
    %v478 = vrcp.pop %v477
    %v479 = vmul.f32 %v471, %v478
    %v480 = vmax.f32 %v479, 1e-06
    %v481 = vmin.f32 %v480, 0.999999
    %v482 = vlog2.pop %v481
    %v483 = vmul.f32 %v482, 0.6931472
    %v484 = vrot.slane %v481, 4
    %v485 = vmax.f32 %v481, %v484
    %v486 = vrot.slane %v485, 2
    %v487 = vmax.f32 %v485, %v486
    %v488 = vrot.slane %v487, 1
    %v489 = vmax.f32 %v487, %v488
    %vm490 = vcmp.ge.f32.partialorder %v481, %v489
    %v491 = vsel %vm490, %v155, 8
    %v492 = vrot.slane %v491, 4
    %vm493 = vcmp.lt.s32.totalorder %v491, %v492
    %v494 = vsel %vm493, %v491, %v492
    %v495 = vrot.slane %v494, 2
    %vm496 = vcmp.lt.s32.totalorder %v494, %v495
    %v497 = vsel %vm496, %v494, %v495
    %v498 = vrot.slane %v497, 1
    %vm499 = vcmp.lt.s32.totalorder %v497, %v498
    %v500 = vsel %vm499, %v497, %v498
    %v501 = vsel %vm156, %v481, 0.0
    %502 = vmatprep.subr.mxu0 0.0
    %503 = vmatpush1.msra.mxu0 0.0
    %504 = vmatprep.subr.mxu0 0.0
    %505 = vmatpush1.msra.mxu0 0.0
    %506 = vmatprep.subr.mxu0 0.0
    %507 = vmatpush1.msra.mxu0 0.0
    %508 = vmatprep.subr.mxu0 0.0
    %509 = vmatpush1.msra.mxu0 0.0
    %510 = vmatprep.subr.mxu0 0.0
    %511 = vmatpush1.msra.mxu0 0.0
    %512 = vmatprep.subr.mxu0 0.0
    %513 = vmatpush1.msra.mxu0 0.0
    %514 = vmatprep.subr.mxu0 0.0
    %515 = vmatpush1.msra.mxu0 0.0
    %516 = vmatprep.subr.mxu0 0.0
    %517 = vmatpush1.msra.mxu0 0.0
    %518 = vmatprep.subr.mxu0 0.0
    %519 = vmatpush1.msra.mxu0 0.0
    %520 = vmatprep.subr.mxu0 0.0
    %521 = vmatpush1.msra.mxu0 0.0
    %522 = vmatprep.subr.mxu0 0.0
    %523 = vmatpush1.msra.mxu0 0.0
    %524 = vmatprep.subr.mxu0 0.0
    %525 = vmatpush1.msra.mxu0 0.0
    %526 = vmatprep.subr.mxu0 0.0
    %527 = vmatpush1.msra.mxu0 0.0
    %528 = vmatprep.subr.mxu0 0.0
    %529 = vmatpush1.msra.mxu0 0.0
    %530 = vmatprep.subr.mxu0 0.0
    %531 = vmatpush1.msra.mxu0 0.0
    %532 = vmatprep.subr.mxu0 0.0
    %533 = vmatpush1.msra.mxu0 %v501
    %534 = vmatprep.subr.mxu0 0.0
    %535 = vmatpush2.msra.mxu0 0.0
    %536 = vmatprep.subr.mxu0 0.0
    %537 = vmatpush2.msra.mxu0 0.0
    %538 = vmatprep.subr.mxu0 0.0
    %539 = vmatpush2.msra.mxu0 0.0
    %540 = vmatprep.subr.mxu0 0.0
    %541 = vmatpush2.msra.mxu0 0.0
    %542 = vmatprep.subr.mxu0 0.0
    %543 = vmatpush2.msra.mxu0 0.0
    %544 = vmatprep.subr.mxu0 0.0
    %545 = vmatpush2.msra.mxu0 0.0
    %546 = vmatprep.subr.mxu0 0.0
    %547 = vmatpush2.msra.mxu0 0.0
    %548 = vmatprep.subr.mxu0 0.0
    %549 = vmatpush2.msra.mxu0 0.0
    %550 = vmatprep.subr.mxu0 0.0
    %551 = vmatpush2.msra.mxu0 0.0
    %552 = vmatprep.subr.mxu0 0.0
    %553 = vmatpush2.msra.mxu0 0.0
    %554 = vmatprep.subr.mxu0 0.0
    %555 = vmatpush2.msra.mxu0 0.0
    %556 = vmatprep.subr.mxu0 0.0
    %557 = vmatpush2.msra.mxu0 0.0
    %558 = vmatprep.subr.mxu0 0.0
    %559 = vmatpush2.msra.mxu0 0.0
    %560 = vmatprep.subr.mxu0 0.0
    %561 = vmatpush2.msra.mxu0 0.0
    %562 = vmatprep.subr.mxu0 0.0
    %563 = vmatpush2.msra.mxu0 0.0
    %564 = vmatprep.subr.mxu0 0.0
    %565 = vmatpush2.msra.mxu0 0.0
    %566 = vmatprep.mubr.f32.mxu0 0.0
    %567 = vmatmul.mubr.f32.gmra.mxu0 %v203
    %v568 = vpop.f32.mrf.mxu0
    %v569 = vadd.f32 0.0, %v568
    %v570 = vpop.f32.mrf.mxu0
    %571 = vdwg.mxu0
    %v572 = vld [vmem:[%s1 + $0x2] sm:$0x1]
    %v574 = vrot.slane %v569, 5
    %v576 = vmul.f32 %v572, %v574
    %v577 = vlaneseq
    %v578 = vshrl.u32 %v577, 7
    %v579 = vsub.s32 0, %v578
    %v580 = vrot.slane %v576, %v579
    %vm581 = vcmp.lt.f32.partialorder %v569, %v580
    %v582 = vsel %vm581, 1, 0
    %v583 = vrot.slane %v582, 4
    %v584 = vadd.s32 %v582, %v583
    %v585 = vrot.slane %v584, 2
    %v586 = vadd.s32 %v584, %v585
    %v587 = vrot.slane %v586, 1
    %v588 = vadd.s32 %v586, %v587
    %vm589 = vcmp.lt.s32.totalorder %v588, 5
    %v590 = vsel %vm589, %v588, 5
    %vm591 = vcmp.eq.s32.totalorder %v155, %v590
    %v592 = vsel %vm591, %v483, 0.0
    %v593 = vrot.slane %v592, 4
    %v594 = vadd.f32 %v592, %v593
    %v595 = vrot.slane %v594, 2
    %v596 = vadd.f32 %v594, %v595
    %v597 = vrot.slane %v596, 1
    %v598 = vadd.f32 %v596, %v597
    %v599 = vsub.f32 0.0, %v481
    %v600 = vmul.f32 %v599, %v483
    %v601 = vsel %vm156, %v600, 0.0
    %v602 = vrot.slane %v601, 4
    %v603 = vadd.f32 %v601, %v602
    %v604 = vrot.slane %v603, 2
    %v605 = vadd.f32 %v603, %v604
    %v606 = vrot.slane %v605, 1
    %v607 = vadd.f32 %v605, %v606
    %v608 = vadd.f32 %v459, %v607
    %vm609 = vcmp.eq.s32.totalorder %v500, %v590
    %v610 = vsel %vm609, 1, 0
    %v611 = vadd.s32 %v462, %v610
    %vm612 = vcmp.gt.f32.partialorder %v38, 0.0
    %v613 = vsel %vm612, %v611, 0
    %v614 = vlaneseq
    %v615 = vshrl.u32 %v614, 7
    %v616 = vsub.s32 0, %v615
    %v617 = vrot.slane %v613, %v616
    %vm618 = vcmask 1040384
    %v619 = vsel %vm618, %v293, %v441
    %vm620 = vcmask 1041408
    %v621 = vsel %vm620, %v619, %v590
    %vm622 = vcmask 1042432
    %v623 = vsel %vm622, %v621, %v617
    %624 = vst [vmem:[#allocation5] sm:$0xf] %v623
    %v625 = vmul.f32 %v608, %v38
    %v627 = vrot.slane %v625, 5
    %v629 = vsel %vm618, %v301, %v449
    %v630 = vsel %vm620, %v629, %v598
    %v631 = vsel %vm622, %v630, %v627
    %632 = vst [vmem:[#allocation6] sm:$0xf] %v631
    // Predicated region
    $region26: #{tpu_custom_call.1} parent=1 // pred_check
      _
    $region27: #{tpu_custom_call.1} parent=1 // pred_check_branch
      %634 = sbr.rel (0) target = $region29
    $region28: #{tpu_custom_call.1} parent=1 // pred_region
      %s636 = ssub.s32 64, 64
      %637 = vsyncadd [#allocation4], %s636
      %s639 = sshll.u32 [#allocation5], 4
      %s640 = int_to_ptr.vmem [resolvable:$true] %s639
      %642 = dma.vmem_to_hbm [thread:$0]  %s640, 64, %s5, [#allocation4]
    $region29: #{tpu_custom_call.1} parent=1 // pred_fallthru
      _
    // Predicated region
    $region30: #{tpu_custom_call.1} parent=1 // pred_check
      _
    $region31: #{tpu_custom_call.1} parent=1 // pred_check_branch
      %644 = sbr.rel (0) target = $region33
    $region32: #{tpu_custom_call.1} parent=1 // pred_region
      %s646 = ssub.s32 64, 64
      %647 = vsyncadd [#allocation7], %s646
      %s649 = sshll.u32 [#allocation6], 4
      %s650 = int_to_ptr.vmem [resolvable:$true] %s649
      %652 = dma.vmem_to_hbm [thread:$0]  %s650, 64, %s6, [#allocation7]
    $region33: #{tpu_custom_call.1} parent=1 // pred_fallthru
      _
    // Predicated region
    $region34: #{tpu_custom_call.1} parent=1 // pred_check
      _
    $region35: #{tpu_custom_call.1} parent=1 // pred_check_branch
      %654 = sbr.rel (0) target = $region37
    $region36: #{tpu_custom_call.1} parent=1 // pred_region
      %655 = dma.done [#allocation4], 64
    $region37: #{tpu_custom_call.1} parent=1 // pred_fallthru
      _
    // Predicated region
    $region38: #{tpu_custom_call.1} parent=1 // pred_check
      _
    $region39: #{tpu_custom_call.1} parent=1 // pred_check_branch
      %657 = sbr.rel (0) target = $region41
    $region40: #{tpu_custom_call.1} parent=1 // pred_region
      %658 = dma.done [#allocation7], 64
    $region41: #{tpu_custom_call.1} parent=1 // pred_fallthru
      _
    %659 = vsyncpa [#allocation3], 1
    %660 = vsyncpa [#allocation4], 1
    %661 = vsyncpa [#allocation7], 1

</llo_original>
